<compile_context>
chip_gen: v5e
topology: v5e:2x2
jax: 0.10.0
libtpu: 0.0.40
codegen_flags: <defaults>
</compile_context>

<pallas_src>
import jax
import jax.numpy as jnp
from jax.experimental import pallas as pl
from jax.experimental.pallas import tpu as pltpu


def _gmm_prior_kernel(mu_hbm, logvar_hbm, mu_out_hbm, logvar_out_hbm, flag_ref):
    # forward() == (mu, logvar): outputs alias the inputs via
    # input_output_aliases, so there is nothing to compute or move.
    # The single SMEM scalar store below only guarantees a non-empty,
    # trivially lowerable kernel body; it touches no tensor data.
    flag_ref[0] = jnp.int32(0)


@jax.jit
def gmm_prior_forward(mu: jax.Array, logvar: jax.Array):
    """Pallas implementation of GMMPrior.forward().

    Args:
      mu:     (K, D) float32 parameter tensor
      logvar: (K, D) float32 parameter tensor
    Returns:
      (mu, logvar) tuple, same shapes/dtypes as inputs.
    """
    assert mu.shape == logvar.shape and mu.dtype == logvar.dtype

    out_shape = (
        jax.ShapeDtypeStruct(mu.shape, mu.dtype),
        jax.ShapeDtypeStruct(logvar.shape, logvar.dtype),
    )

    # Leave tensors where they live (HBM); no BlockSpec tiling => no auto-DMA.
    any_spec = pl.BlockSpec(memory_space=pl.ANY)

    return pl.pallas_call(
        _gmm_prior_kernel,
        in_specs=[any_spec, any_spec],
        out_specs=(any_spec, any_spec),
        out_shape=out_shape,
        scratch_shapes=[pltpu.SMEM((1,), jnp.int32)],
        # Identity forward: output 0 is input 0, output 1 is input 1.
        input_output_aliases={0: 0, 1: 1},
    )(mu, logvar)


class GMMPriorPallas:
    """Mirror of the PyTorch GMMPrior module with deterministic init."""

    def __init__(self, data_size, key):
        self.data_size = list(data_size)
        self.number_components = data_size[0]
        self.output_size = data_size[1]
        k_mu, k_lv = jax.random.split(key)
        # torch.randn -> standard normal init, reproduced deterministically.
        self.mu = jax.random.normal(k_mu, tuple(data_size), dtype=jnp.float32)
        self.logvar = jax.random.normal(k_lv, tuple(data_size), dtype=jnp.float32)

    def __call__(self):
        return gmm_prior_forward(self.mu, self.logvar)


if __name__ == "__main__":
    key = jax.random.PRNGKey(0)
    # Small shapes consistent with the module: number_components=8, output_size=32
    data_size = [8, 32]
    prior = GMMPriorPallas(data_size, key)

    mu_out, logvar_out = prior()
    jax.block_until_ready((mu_out, logvar_out))

    # Sanity check against the trivially-correct reference (identity).
    assert mu_out.shape == tuple(data_size) and logvar_out.shape == tuple(data_size)
    assert mu_out.dtype == prior.mu.dtype and logvar_out.dtype == prior.logvar.dtype
    assert jnp.allclose(mu_out, prior.mu) and jnp.allclose(logvar_out, prior.logvar)

    print("KERNEL_OK")
</pallas_src>

<mosaic_0001>
module attributes {stable_mosaic.version = 11 : i64} {
  func.func @_gmm_prior_kernel(%arg0: memref<8x32xf32, #tpu.memory_space<any>>, %arg1: memref<8x32xf32, #tpu.memory_space<any>>, %arg2: memref<8x32xf32, #tpu.memory_space<any>>, %arg3: memref<8x32xf32, #tpu.memory_space<any>>, %arg4: memref<1xi32, #tpu.memory_space<smem>>) attributes {dimension_semantics = [], scalar_prefetch = 0 : i64, scratch_operands = 1 : i64, tpu.core_type = #tpu.core_type<tc>} {
    %c0_i32 = arith.constant 0 : i32
    %c0 = arith.constant 0 : index
    %0 = memref.load %arg4[%c0] : memref<1xi32, #tpu.memory_space<smem>>
    memref.store %c0_i32, %arg4[%c0] : memref<1xi32, #tpu.memory_space<smem>>
    return
  }
}

</mosaic_0001>

<llo_original>
// kernel: gmm_prior_forward.1
$region0: #{gmm_prior_forward.1}
  #allocation0 [shape = 'u32[]', space=smem, size = 0x4, offset = 0x4, fixed_abs, tag = 'smem constant byte address 0x4 - core index']
  #allocation1 [shape = 'u32[72,128]{1,0:T(1,128)}', space=vmem, size = 0x9000, scoped, tag = 'internal scratch']
  #allocation2 [shape = 's32[1]{0:T(128)}', space=smem, size = 0x200, scoped, tag = 'scratch operand']
  %s0 = inlined_call_operand.hbm [shape: f32[8,32], index: 0, kind: input, shape index: {}, may-alias: {0,2}]
  %s1 = inlined_call_operand.hbm [shape: f32[8,32], index: 1, kind: input, shape index: {}, may-alias: {1,3}]
  %s2 = inlined_call_operand.hbm [shape: f32[8,32], index: 2, kind: output, shape index: {0}, may-alias: {0,2}]
  %s3 = inlined_call_operand.hbm [shape: f32[8,32], index: 3, kind: output, shape index: {1}, may-alias: {1,3}]
  %4 = xla_tuple %s2, %s3
  %s5 = sld [smem:[#allocation0]]
  $region2: #{gmm_prior_forward.1} parent=0
    _
  %s7 = ssub.s32 1, %s5
  %s8 = scalar_select 0, %s7, %s5
  %s9 = scalar_lea.smem [#allocation2], 0
  %10 = sst [smem:[%s9]] 0

</llo_original>
